<compile_context>
chip_gen: v6e
topology: v6e:2x2x1
jax: 0.10.0
libtpu: 0.0.40
codegen_flags: <defaults>
</compile_context>

<pallas_src>
import jax
import jax.numpy as jnp
from jax.experimental import pallas as pl
from jax.experimental.pallas import tpu as pltpu


_LANES = 128      # vreg lane width
_SUBLANES = 8     # vreg sublane count (f32)


def _scale_kernel(counts_ref, total_ref, out_ref):
    """counts_ref: (R, 128) f32 VMEM — flattened pred slots (slot 0 and all
    padding slots already hold 0.0).
    total_ref:  (1, 1)  f32 SMEM — total_patients (runtime value, not baked).
    out_ref:    (R, 128) f32 VMEM = counts / total.

    One full-vreg VPU divide per 1024 elements; the SMEM scalar read rides the
    scalar slot, so it is free relative to the vector op.
    """
    out_ref[...] = counts_ref[...] / total_ref[0, 0]


def _build_pred(raw_counts, total_patients):
    """One-time construction of the constant `pred` vector (mirrors __init__).

    Pads [0.0, counts...] to a sublane/lane-dense (8*k, 128) f32 tile with a
    single `jnp.pad`, runs one gridless Pallas kernel that divides by the
    patient total (passed via SMEM), and slices back to length P = codes + 1.
    """
    num_codes = int(raw_counts.shape[0])
    P = num_codes + 1

    rows = -(-P // _LANES)                        # ceil(P / 128)
    rows = -(-rows // _SUBLANES) * _SUBLANES      # round up to multiple of 8
    p_pad = rows * _LANES

    # Single pad op: one leading zero (the prepended 0.0 slot) plus trailing
    # zeros up to the tile size; then a row-major reshape to (rows, 128).
    counts_row = jnp.pad(
        raw_counts.astype(jnp.float32).reshape(1, num_codes),
        ((0, 0), (1, p_pad - P)),
    )
    counts_tile = counts_row.reshape(rows, _LANES)

    # Runtime scalar operand — keeps the kernel value-independent.
    # NOTE: like the original module, no guard for total_patients == 0.
    total = jnp.asarray(total_patients, dtype=jnp.float32).reshape(1, 1)

    out = pl.pallas_call(
        _scale_kernel,
        out_shape=jax.ShapeDtypeStruct((rows, _LANES), jnp.float32),
        in_specs=[
            pl.BlockSpec(memory_space=pltpu.MemorySpace.VMEM),
            pl.BlockSpec(memory_space=pltpu.MemorySpace.SMEM),
        ],
        out_specs=pl.BlockSpec(memory_space=pltpu.MemorySpace.VMEM),
    )(counts_tile, total)

    return out.reshape(-1)[:P]  # -> (P,) 1-D constant pred vector


class DumbJax:
    """JAX/Pallas analogue of the PyTorch `Dumb` module."""

    def __init__(self, raw_counts, total_patients):
        # TODO(synk): the original derives counts from InputGenJ death tables
        # (Counter over death codes) and stores pred as float64 numpy; that
        # data pipeline is not reproducible here, so counts/total are passed
        # in and the TPU path keeps float32.
        # No block_until_ready: the tiny one-time launch resolves lazily.
        self.pred = _build_pred(raw_counts, total_patients)

    def forward(self, x):
        # Mirrors Dumb.forward: the input is ignored and the cached constant
        # prediction vector is returned — no per-call pallas_call launch.
        del x
        return self.pred


if __name__ == "__main__":
    key = jax.random.PRNGKey(0)
    k_counts, k_input = jax.random.split(key)

    # Synthetic deterministic stand-ins for the data-derived quantities
    # (InputGenJ / death tables are not reproducible here).
    num_codes = 31                       # number of distinct death codes
    P = num_codes + 1                    # pred length = [0] + proportions
    total_patients = 1000.0

    raw_counts = jax.random.randint(
        k_counts, (num_codes,), minval=1, maxval=200).astype(jnp.float32)

    model = DumbJax(raw_counts, total_patients)

    # The forward input is ignored by the module; give it an arbitrary shape.
    x = jax.random.normal(k_input, (2, 4, 16, 16), dtype=jnp.float32)

    pred = jax.block_until_ready(model.forward(x))
    pred_again = model.forward(x)   # pure cache hit, no kernel launch

    # Reference check in plain JAX (same count/total division semantics).
    ref = jnp.concatenate(
        [jnp.zeros((1,), jnp.float32),
         raw_counts / jnp.float32(total_patients)])
    assert pred.shape == (P,)
    assert jnp.allclose(pred, ref, atol=1e-7), "mismatch vs reference"
    assert pred_again is pred, "forward() must return the cached constant"

    print("KERNEL_OK")
</pallas_src>

<mosaic_0001>
module attributes {stable_mosaic.version = 11 : i64} {
  func.func @_scale_kernel(%arg0: memref<8x128xf32, #tpu.memory_space<vmem>>, %arg1: memref<1x1xf32, #tpu.memory_space<smem>>, %arg2: memref<8x128xf32, #tpu.memory_space<vmem>>) attributes {dimension_semantics = [], scalar_prefetch = 0 : i64, scratch_operands = 0 : i64, tpu.core_type = #tpu.core_type<tc>} {
    %c0 = arith.constant 0 : index
    %c0_0 = arith.constant 0 : index
    %0 = vector.load %arg0[%c0, %c0_0] : memref<8x128xf32, #tpu.memory_space<vmem>>, vector<8x128xf32>
    %c0_1 = arith.constant 0 : index
    %c0_2 = arith.constant 0 : index
    %1 = memref.load %arg1[%c0_1, %c0_2] : memref<1x1xf32, #tpu.memory_space<smem>>
    %2 = vector.broadcast %1 : f32 to vector<8x128xf32>
    %3 = arith.divf %0, %2 : vector<8x128xf32>
    %c0_3 = arith.constant 0 : index
    %c0_4 = arith.constant 0 : index
    %4 = vector.load %arg2[%c0_3, %c0_4] : memref<8x128xf32, #tpu.memory_space<vmem>>, vector<8x128xf32>
    tpu.vector_store %arg2[%c0_3, %c0_4], %3 {strides = array<i32>} : memref<8x128xf32, #tpu.memory_space<vmem>>, vector<8x128xf32>,
    return
  }
}

</mosaic_0001>

<llo_original>
// kernel: tpu_custom_call.1
$region0: #{tpu_custom_call.1}
  #allocation0 [shape = 'u32[]', space=smem, size = 0x4, offset = 0x4, fixed_abs, tag = 'smem constant byte address 0x4 - core index']
  #allocation1 [shape = 'u32[144,128]{1,0:T(1,128)}', space=vmem, size = 0x12000, scoped, tag = 'internal scratch']
  #allocation2 [shape = 'f32[1,1]{1,0:T(1,128)S(6)}', space=smem, size = 0x200, scoped, tag = 'scoped memory for tpu_custom_call.1']
  %s0 = inlined_call_operand.hbm [shape: f32[8,128], index: 0, kind: input, shape index: {}]
  %s1 = inlined_call_operand.<no memory space> [shape: f32[1,1], index: 1, kind: input, shape index: {}]
  %s2 = inlined_call_operand.hbm [shape: f32[8,128], index: 2, kind: output, shape index: {}]
  %s3 = sld [smem:[#allocation0]]
  $region22: #{tpu_custom_call.1} parent=0
    _
  %s5 = ssub.s32 1, %s3
  %s6 = scalar_select 0, %s5, %s3
  %7 = sst [smem:[#allocation2]] %s1
  $region1: #{tpu_custom_call.1} parent=0
    #allocation3 [shape = 'u8[4096]{0}', space=vmem, size = 0x1000, scoped, tag = 'input window, operand 0, single buffered']
    #allocation4 [shape = 's32[1]{0}', space=sflag, size = 0x4, scoped, tag = 'scoped memory for tpu_custom_call.1']
    #allocation5 [shape = 's32[1]{0}', space=sflag, size = 0x4, scoped, tag = 'scoped memory for tpu_custom_call.1']
    #allocation6 [shape = 'u8[4096]{0}', space=vmem, size = 0x1000, scoped, tag = 'output window, operand 0, single buffered']
    %8 = vsyncpa [#allocation4], 0
    %9 = vsyncpa [#allocation5], 0
    // Predicated region
    $region2: #{tpu_custom_call.1} parent=1 // pred_check
      _
    $region3: #{tpu_custom_call.1} parent=1 // pred_check_branch
      %11 = sbr.rel (0) target = $region5
    $region4: #{tpu_custom_call.1} parent=1 // pred_region
      %s13 = ssub.s32 128, 128
      %14 = vsyncadd [#allocation4], %s13
      %s16 = sshll.u32 [#allocation3], 4
      %s17 = int_to_ptr.vmem [resolvable:$true] %s16
      %19 = dma.hbm_to_vmem [thread:$0]  %s0, 128, %s17, [#allocation4]
    $region5: #{tpu_custom_call.1} parent=1 // pred_fallthru
      _
    // Predicated region
    $region6: #{tpu_custom_call.1} parent=1 // pred_check
      _
    $region7: #{tpu_custom_call.1} parent=1 // pred_check_branch
      %21 = sbr.rel (0) target = $region9
    $region8: #{tpu_custom_call.1} parent=1 // pred_region
      _
    $region9: #{tpu_custom_call.1} parent=1 // pred_fallthru
      _
    // Predicated region
    $region10: #{tpu_custom_call.1} parent=1 // pred_check
      _
    $region11: #{tpu_custom_call.1} parent=1 // pred_check_branch
      %23 = sbr.rel (0) target = $region13
    $region12: #{tpu_custom_call.1} parent=1 // pred_region
      %24 = dma.done [#allocation4], 128
    $region13: #{tpu_custom_call.1} parent=1 // pred_fallthru
      _
    %v25 = vld [vmem:[#allocation3] sm:$0xff]
    %s26 = sld [smem:[#allocation2]]
    %v27 = vstv %s26
    %v28 = vrcp.pop %v27
    %v29 = vmul.f32 %v25, %v28
    %30 = vst [vmem:[#allocation6] sm:$0xff] %v29
    // Predicated region
    $region14: #{tpu_custom_call.1} parent=1 // pred_check
      _
    $region15: #{tpu_custom_call.1} parent=1 // pred_check_branch
      %32 = sbr.rel (0) target = $region17
    $region16: #{tpu_custom_call.1} parent=1 // pred_region
      %s34 = ssub.s32 128, 128
      %35 = vsyncadd [#allocation5], %s34
      %s37 = sshll.u32 [#allocation6], 4
      %s38 = int_to_ptr.vmem [resolvable:$true] %s37
      %40 = dma.vmem_to_hbm [thread:$0]  %s38, 128, %s2, [#allocation5]
    $region17: #{tpu_custom_call.1} parent=1 // pred_fallthru
      _
    // Predicated region
    $region18: #{tpu_custom_call.1} parent=1 // pred_check
      _
    $region19: #{tpu_custom_call.1} parent=1 // pred_check_branch
      %42 = sbr.rel (0) target = $region21
    $region20: #{tpu_custom_call.1} parent=1 // pred_region
      %43 = dma.done [#allocation5], 128
    $region21: #{tpu_custom_call.1} parent=1 // pred_fallthru
      _
    %44 = vsyncpa [#allocation4], 1
    %45 = vsyncpa [#allocation5], 1

</llo_original>
